<compile_context>
chip_gen: v5e
topology: v5e:2x2
jax: 0.10.0
libtpu: 0.0.40
codegen_flags: <defaults>
</compile_context>

<pallas_src>
import functools

import jax
import jax.numpy as jnp
from jax.experimental import pallas as pl
from jax.experimental.pallas import tpu as pltpu


# ---------------------------------------------------------------------------
# Kernels
# ---------------------------------------------------------------------------

def _mean_agg_kernel_direct(src_ref, out_ref, *, inv_s):
    """f32 output: accumulate straight into the resident output block."""
    s = pl.program_id(2)

    @pl.when(s == 0)
    def _init():
        out_ref[...] = jnp.zeros_like(out_ref)

    out_ref[...] += jnp.sum(src_ref[...], axis=1, dtype=jnp.float32)

    @pl.when(s == pl.num_programs(2) - 1)
    def _finalize():
        out_ref[...] = out_ref[...] * inv_s


def _mean_agg_kernel_acc(src_ref, out_ref, acc_ref, *, inv_s):
    """Low-precision output: f32 scratch accumulator, cast once at the end."""
    s = pl.program_id(2)

    @pl.when(s == 0)
    def _init():
        acc_ref[...] = jnp.zeros_like(acc_ref)

    acc_ref[...] += jnp.sum(src_ref[...], axis=1, dtype=jnp.float32)

    @pl.when(s == pl.num_programs(2) - 1)
    def _finalize():
        out_ref[...] = (acc_ref[...] * inv_s).astype(out_ref.dtype)


# ---------------------------------------------------------------------------
# Tiling helpers
# ---------------------------------------------------------------------------

def _pick_tile(dim: int, target: int, align: int) -> int:
    """Largest exact divisor of `dim` that is a multiple of `align` and <= target.

    Falls back to the full dimension (always a legal block shape) when no such
    divisor exists.
    """
    if dim <= target:
        return dim
    t = (min(target, dim) // align) * align
    while t >= align:
        if dim % t == 0:
            return t
        t -= align
    # TODO(synk): prime/odd dims fall back to a single full-dim tile; a ragged
    # (pl.cdiv + masked tail) path would bound VMEM for pathological shapes.
    return dim


def _tpu_generation() -> str:
    try:
        kind = jax.devices()[0].device_kind.lower()
    except Exception:
        return "unknown"
    if "v5 lite" in kind or "v5e" in kind or "v5lite" in kind:
        return "v5e"
    if "v6" in kind:
        return "v6e"
    if "v7" in kind or "tpu7" in kind or kind.endswith("7x"):
        return "v7x"
    return "unknown"


_GEN_CFG = {
    #            scoped-VMEM cap      per-step tile target   batch-tile target
    "v7x":     dict(vmem_cap=48 << 20, tile_target=12 << 20, tb_target=16),
    "v6e":     dict(vmem_cap=96 << 20, tile_target=16 << 20, tb_target=8),
    "v5e":     dict(vmem_cap=96 << 20, tile_target=8 << 20,  tb_target=8),
    "unknown": dict(vmem_cap=48 << 20, tile_target=8 << 20,  tb_target=8),
}


# ---------------------------------------------------------------------------
# Wrapper
# ---------------------------------------------------------------------------

def base_aggregator_forward(src: jax.Array, output_size: int) -> jax.Array:
    """Aggregate (B, S, H) -> (B, output_size) with output_size == H."""
    B, S, H = src.shape
    assert output_size == H, "BaseAggregator output_size must match hidden dim"

    gen = _tpu_generation()
    cfg = _GEN_CFG[gen]
    itemsize = jnp.dtype(src.dtype).itemsize
    tile_target = cfg["tile_target"]

    # dtype-aware sublane alignment for the seq (second-to-last src block) dim
    seq_align = {4: 8, 2: 16, 1: 32}.get(itemsize, 8)

    # Batch tile: multiple of 8 or the full B (output-block sublane legality).
    TB = _pick_tile(B, cfg["tb_target"], 8)

    # Hidden tile: prefer the full H (contiguous DMA rows, drops the h grid
    # axis) whenever one minimal seq slab with full H fits the tile budget.
    if H <= 256 or TB * seq_align * H * itemsize <= tile_target:
        TH = H
    else:
        th_target = max(
            128, (tile_target // (TB * seq_align * itemsize) // 128) * 128)
        TH = _pick_tile(H, th_target, 128)

    # Seq tile: fill the remaining tile-byte budget.
    ts_target = max(seq_align, tile_target // (TB * TH * itemsize))
    ts_target = max(seq_align, (ts_target // seq_align) * seq_align)
    TS = _pick_tile(S, ts_target, seq_align)

    # v7x has 2 TensorCores sharded over "parallel" axes: make sure the
    # parallel grid extent is >= 2 when we can split cleanly.
    if gen == "v7x" and (B // TB) * (H // TH) < 2:
        if TH == H and H % 256 == 0:
            TH = H // 2
        elif TB == B and B % 16 == 0:
            TB = B // 2
        # TODO(synk): tiny B*H shapes on v7x cannot be split cleanly; one TC idles.

    grid = (B // TB, H // TH, S // TS)

    out_dtype = src.dtype
    direct_f32 = jnp.dtype(out_dtype) == jnp.dtype(jnp.float32)

    # Scoped-VMEM request derived from the ACTUAL tiles chosen.
    src_tile_bytes = TB * TS * TH * itemsize
    out_tile_bytes = TB * TH * jnp.dtype(out_dtype).itemsize
    acc_bytes = 0 if direct_f32 else TB * TH * 4
    needed = 2 * src_tile_bytes + 2 * out_tile_bytes + acc_bytes + (2 << 20)
    vmem_limit = min(cfg["vmem_cap"], max(32 << 20, needed))

    if direct_f32:
        kernel = functools.partial(_mean_agg_kernel_direct, inv_s=1.0 / S)
        scratch_shapes = []
    else:
        kernel = functools.partial(_mean_agg_kernel_acc, inv_s=1.0 / S)
        scratch_shapes = [pltpu.VMEM((TB, TH), jnp.float32)]

    return pl.pallas_call(
        kernel,
        out_shape=jax.ShapeDtypeStruct((B, H), out_dtype),
        grid_spec=pltpu.PrefetchScalarGridSpec(
            num_scalar_prefetch=0,
            grid=grid,
            in_specs=[
                pl.BlockSpec((TB, TS, TH), lambda b, h, s: (b, s, h)),
            ],
            out_specs=pl.BlockSpec((TB, TH), lambda b, h, s: (b, h)),
            scratch_shapes=scratch_shapes,
        ),
        compiler_params=pltpu.CompilerParams(
            dimension_semantics=("parallel", "parallel", "arbitrary"),
            vmem_limit_bytes=vmem_limit,
        ),
    )(src)


# ---------------------------------------------------------------------------
# Self-test
# ---------------------------------------------------------------------------

if __name__ == "__main__":
    key = jax.random.PRNGKey(0)
    B, S, H = 2, 8, 32
    output_size = H

    # f32 path (direct accumulation into the output block)
    src_f32 = jax.random.normal(key, (B, S, H), dtype=jnp.float32)
    out_f32 = jax.block_until_ready(base_aggregator_forward(src_f32, output_size))
    ref_f32 = jnp.mean(src_f32, axis=1)
    assert out_f32.shape == (B, output_size)
    assert jnp.allclose(out_f32, ref_f32, atol=1e-5, rtol=1e-5)

    # bf16 path (f32 scratch accumulator, cast at finalize)
    src_bf16 = src_f32.astype(jnp.bfloat16)
    out_bf16 = jax.block_until_ready(base_aggregator_forward(src_bf16, output_size))
    ref_bf16 = jnp.mean(src_bf16.astype(jnp.float32), axis=1)
    assert out_bf16.shape == (B, output_size)
    assert jnp.allclose(out_bf16.astype(jnp.float32), ref_bf16, atol=1e-2, rtol=1e-2)

    print("KERNEL_OK")
</pallas_src>

<mosaic_0001>
module attributes {stable_mosaic.version = 11 : i64} {
  func.func @_mean_agg_kernel_direct(%arg0: i32, %arg1: i32, %arg2: i32, %arg3: memref<2x8x32xf32, #tpu.memory_space<vmem>>, %arg4: memref<2x32xf32, #tpu.memory_space<vmem>>) attributes {dimension_semantics = [#tpu.dimension_semantics<parallel>, #tpu.dimension_semantics<parallel>, #tpu.dimension_semantics<arbitrary>], iteration_bounds = array<i64: 1, 1, 1>, scalar_prefetch = 0 : i64, scratch_operands = 0 : i64, tpu.core_type = #tpu.core_type<tc>, window_params = [{transform_indices = @transform_0, window_bounds = array<i64: 2, 8, 32>}, {transform_indices = @transform_1, window_bounds = array<i64: 2, 32>}]} {
    %c0_i32 = arith.constant 0 : i32
    %0 = arith.cmpi eq, %arg2, %c0_i32 : i32
    %1 = arith.extui %0 : i1 to i32
    %c0_i32_0 = arith.constant 0 : i32
    %2 = arith.cmpi ne, %1, %c0_i32_0 : i32
    scf.if %2 {
      %cst_9 = arith.constant 0.000000e+00 : f32
      %11 = vector.broadcast %cst_9 : f32 to vector<2x32xf32>
      %c0_10 = arith.constant 0 : index
      %c0_11 = arith.constant 0 : index
      %12 = vector.load %arg4[%c0_10, %c0_11] : memref<2x32xf32, #tpu.memory_space<vmem>>, vector<2x32xf32>
      tpu.vector_store %arg4[%c0_10, %c0_11], %11 {strides = array<i32>} : memref<2x32xf32, #tpu.memory_space<vmem>>, vector<2x32xf32>,
    } else {
    }
    %c0 = arith.constant 0 : index
    %c0_1 = arith.constant 0 : index
    %3 = vector.load %arg4[%c0, %c0_1] : memref<2x32xf32, #tpu.memory_space<vmem>>, vector<2x32xf32>
    %c0_2 = arith.constant 0 : index
    %c0_3 = arith.constant 0 : index
    %c0_4 = arith.constant 0 : index
    %4 = vector.load %arg3[%c0_2, %c0_3, %c0_4] : memref<2x8x32xf32, #tpu.memory_space<vmem>>, vector<2x8x32xf32>
    %cst = arith.constant dense<0.000000e+00> : vector<2x32xf32>
    %5 = vector.multi_reduction <add>, %4, %cst [1] : vector<2x8x32xf32> to vector<2x32xf32>
    %6 = arith.addf %3, %5 : vector<2x32xf32>
    %c0_5 = arith.constant 0 : index
    %c0_6 = arith.constant 0 : index
    %7 = vector.load %arg4[%c0_5, %c0_6] : memref<2x32xf32, #tpu.memory_space<vmem>>, vector<2x32xf32>
    tpu.vector_store %arg4[%c0_5, %c0_6], %6 {strides = array<i32>} : memref<2x32xf32, #tpu.memory_space<vmem>>, vector<2x32xf32>,
    %c0_i32_7 = arith.constant 0 : i32
    %8 = arith.cmpi eq, %arg2, %c0_i32_7 : i32
    %9 = arith.extui %8 : i1 to i32
    %c0_i32_8 = arith.constant 0 : i32
    %10 = arith.cmpi ne, %9, %c0_i32_8 : i32
    scf.if %10 {
      %c0_9 = arith.constant 0 : index
      %c0_10 = arith.constant 0 : index
      %11 = vector.load %arg4[%c0_9, %c0_10] : memref<2x32xf32, #tpu.memory_space<vmem>>, vector<2x32xf32>
      %cst_11 = arith.constant 1.250000e-01 : f32
      %12 = vector.broadcast %cst_11 : f32 to vector<2x32xf32>
      %13 = arith.mulf %11, %12 : vector<2x32xf32>
      %c0_12 = arith.constant 0 : index
      %c0_13 = arith.constant 0 : index
      %14 = vector.load %arg4[%c0_12, %c0_13] : memref<2x32xf32, #tpu.memory_space<vmem>>, vector<2x32xf32>
      tpu.vector_store %arg4[%c0_12, %c0_13], %13 {strides = array<i32>} : memref<2x32xf32, #tpu.memory_space<vmem>>, vector<2x32xf32>,
    } else {
    }
    return
  }
  func.func @transform_0(%arg0: i32, %arg1: i32, %arg2: i32) -> (i32, i32, i32) {
    %c0_i32 = arith.constant 0 : i32
    return %arg0, %arg2, %arg1 : i32, i32, i32
  }
  func.func @transform_1(%arg0: i32, %arg1: i32, %arg2: i32) -> (i32, i32) {
    %c0_i32 = arith.constant 0 : i32
    return %arg0, %arg1 : i32, i32
  }
}

</mosaic_0001>

<llo_original>
// kernel: tpu_custom_call.1
$region0: #{tpu_custom_call.1}
  #allocation0 [shape = 'u32[]', space=smem, size = 0x4, offset = 0x4, fixed_abs, tag = 'smem constant byte address 0x4 - core index']
  #allocation1 [shape = 'u32[72,128]{1,0:T(1,128)}', space=vmem, size = 0x9000, scoped, tag = 'internal scratch']
  %s0 = inlined_call_operand.hbm [shape: f32[2,8,32], index: 0, kind: input, shape index: {}]
  %s1 = inlined_call_operand.hbm [shape: f32[2,32], index: 1, kind: output, shape index: {}]
  %s2 = sld [smem:[#allocation0]]
  $region26: #{tpu_custom_call.1} parent=0
    _
  %s4 = ssub.s32 1, %s2
  %s5 = scalar_select 0, %s4, %s2
  $region1: #{tpu_custom_call.1} parent=0
    #allocation2 [shape = 'u8[8192]{0}', space=vmem, size = 0x2000, scoped, tag = 'input window, operand 0, single buffered']
    #allocation3 [shape = 's32[1]{0}', space=sflag, size = 0x4, scoped, tag = 'scoped memory for tpu_custom_call.1']
    #allocation4 [shape = 's32[1]{0}', space=sflag, size = 0x4, scoped, tag = 'scoped memory for tpu_custom_call.1']
    #allocation5 [shape = 'u8[1024]{0}', space=vmem, size = 0x400, scoped, tag = 'output window, operand 0, single buffered']
    %6 = vsyncpa [#allocation3], 0
    %7 = vsyncpa [#allocation4], 0
    // Predicated region
    $region2: #{tpu_custom_call.1} parent=1 // pred_check
      _
    $region3: #{tpu_custom_call.1} parent=1 // pred_check_branch
      %9 = sbr.rel (0) target = $region5
    $region4: #{tpu_custom_call.1} parent=1 // pred_region
      %11 = vsyncadd [#allocation3], 0
      %s12 = sshll.u32 %s0, 4
      %s13 = int_to_ptr.hbm [resolvable:$true] %s12
      %s14 = sshll.u32 [#allocation2], 4
      %s15 = int_to_ptr.vmem [resolvable:$true] %s14
      %20 = dma.hbm_to_vmem [thread:$0]  %s13, 256, %s15, [#allocation3], 128, 128, 8
    $region5: #{tpu_custom_call.1} parent=1 // pred_fallthru
      _
    // Predicated region
    $region6: #{tpu_custom_call.1} parent=1 // pred_check
      _
    $region7: #{tpu_custom_call.1} parent=1 // pred_check_branch
      %22 = sbr.rel (0) target = $region9
    $region8: #{tpu_custom_call.1} parent=1 // pred_region
      %24 = dma.done [#allocation3], 256
    $region9: #{tpu_custom_call.1} parent=1 // pred_fallthru
      _
    %p25 = scmp.eq.s32.totalorder 0, 0
    // Predicated region
    $region10: #{tpu_custom_call.1} parent=1 // pred_check
      %p26 = pneg %p25
    $region11: #{tpu_custom_call.1} parent=1 // pred_check_branch
      %28 = sbr.rel (%p26) target = $region13
    $region12: #{tpu_custom_call.1} parent=1 // pred_region
      %vm29 = vcmask 254976
      %30 = vst.msk [vmem:[#allocation5] sm:$0x3] %vm29, 0.0
    $region13: #{tpu_custom_call.1} parent=1 // pred_fallthru
      _
    %v31 = vld [vmem:[#allocation5] sm:$0x3]
    %v32 = vld [vmem:[#allocation2] sm:$0xff]
    %v33 = vld [vmem:[#allocation2 + $0x8] sm:$0xff]
    %vm34 = vcmask 261120
    %v35 = vsel %vm34, %v32, 0.0
    %v36 = vrot.slane %v35, 4
    %v37 = vadd.f32 %v35, %v36
    %v38 = vrot.slane %v37, 2
    %v39 = vadd.f32 %v37, %v38
    %v40 = vrot.slane %v39, 1
    %v41 = vadd.f32 %v39, %v40
    %v42 = vsel %vm34, %v33, 0.0
    %v43 = vrot.slane %v42, 4
    %v44 = vadd.f32 %v42, %v43
    %v45 = vrot.slane %v44, 2
    %v46 = vadd.f32 %v44, %v45
    %v47 = vrot.slane %v46, 1
    %v48 = vadd.f32 %v46, %v47
    %vm51 = vcmask 1041409
    %v52 = vsel %vm51, %v48, %v41
    %v54 = vadd.f32 %v31, %v52
    %vm55 = vcmask 254976
    %56 = vst.msk [vmem:[#allocation5] sm:$0x3] %vm55, %v54
    // Predicated region
    $region14: #{tpu_custom_call.1} parent=1 // pred_check
      %p57 = pneg %p25
    $region15: #{tpu_custom_call.1} parent=1 // pred_check_branch
      %59 = sbr.rel (%p57) target = $region17
    $region16: #{tpu_custom_call.1} parent=1 // pred_region
      %v60 = vld [vmem:[#allocation5] sm:$0x3]
      %v61 = vmul.f32 %v60, 0.125
      %62 = vst.msk [vmem:[#allocation5] sm:$0x3] %vm55, %v61
    $region17: #{tpu_custom_call.1} parent=1 // pred_fallthru
      _
    // Predicated region
    $region18: #{tpu_custom_call.1} parent=1 // pred_check
      _
    $region19: #{tpu_custom_call.1} parent=1 // pred_check_branch
      %64 = sbr.rel (0) target = $region21
    $region20: #{tpu_custom_call.1} parent=1 // pred_region
      %66 = vsyncadd [#allocation4], 0
      %s68 = sshll.u32 [#allocation5], 4
      %s69 = int_to_ptr.vmem [resolvable:$true] %s68
      %s70 = sshll.u32 %s1, 4
      %s71 = int_to_ptr.hbm [resolvable:$true] %s70
      %73 = dma.vmem_to_hbm [thread:$0]  %s69, 32, %s71, [#allocation4]
    $region21: #{tpu_custom_call.1} parent=1 // pred_fallthru
      _
    // Predicated region
    $region22: #{tpu_custom_call.1} parent=1 // pred_check
      _
    $region23: #{tpu_custom_call.1} parent=1 // pred_check_branch
      %75 = sbr.rel (0) target = $region25
    $region24: #{tpu_custom_call.1} parent=1 // pred_region
      %77 = dma.done [#allocation4], 32
    $region25: #{tpu_custom_call.1} parent=1 // pred_fallthru
      _
    %78 = vsyncpa [#allocation3], 1
    %79 = vsyncpa [#allocation4], 1

</llo_original>
